<compile_context>
chip_gen: v7x
topology: tpu7x:2x2x1
jax: 0.10.0
libtpu: 0.0.40
codegen_flags: <defaults>
</compile_context>

<pallas_src>
import jax
import jax.numpy as jnp
from jax.experimental import pallas as pl
from jax.experimental.pallas import tpu as pltpu


def rnn_qnet_seq_kernel(
    x_ref, h0_ref,
    w1_ref, b1_ref,
    wih_ref, bih_ref,
    whh_ref, bhh_ref,
    w2_ref, b2_ref,
    q_ref, hout_ref,
    h_scr,
):
    t = pl.program_id(1)
    H = h_scr.shape[-1]

    # Load the initial hidden state for this batch block at the first timestep.
    @pl.when(t == 0)
    def _():
        h_scr[...] = h0_ref[...]

    x = x_ref[0]            # (block_B, in_dim)
    h = h_scr[...]          # (block_B, H)

    # Layer1 + ReLU
    a = jnp.dot(x, w1_ref[...], preferred_element_type=jnp.float32) + b1_ref[...]
    a = jnp.maximum(a, 0.0)

    # Fused GRU gate matmuls: (block_B, H) @ (H, 3H); columns ordered [r | z | n].
    gi = jnp.dot(a, wih_ref[...], preferred_element_type=jnp.float32) + bih_ref[...]
    gh = jnp.dot(h, whh_ref[...], preferred_element_type=jnp.float32) + bhh_ref[...]

    r = jax.nn.sigmoid(gi[:, 0:H] + gh[:, 0:H])
    z = jax.nn.sigmoid(gi[:, H:2 * H] + gh[:, H:2 * H])
    n = jnp.tanh(gi[:, 2 * H:3 * H] + r * gh[:, 2 * H:3 * H])
    h_new = (1.0 - z) * n + z * h

    # Carry hidden state in VMEM and also expose it as an output (written back
    # to HBM only when the batch block changes / at the end).
    h_scr[...] = h_new
    hout_ref[...] = h_new

    # Layer2
    q_ref[0] = jnp.dot(h_new, w2_ref[...], preferred_element_type=jnp.float32) + b2_ref[...]


def rnn_qnetwork_rollout(x_seq, h0, params, *, block_b=8):
    """Run T recurrent steps inside one pallas_call.

    x_seq: (T, B, num_inputs + num_actions), h0: (B, H).
    Returns (q_seq (T, B, A), h_final (B, H)).
    """
    T, B, in_dim = x_seq.shape
    H = h0.shape[1]
    A = params["w2t"].shape[1]
    assert B % block_b == 0, "batch must be a multiple of the batch block size"

    grid = (B // block_b, T)

    def wspec(arr):
        # Full-array block, constant index_map -> stays resident in VMEM.
        return pl.BlockSpec(arr.shape, lambda b, t: (0,) * arr.ndim)

    q_seq, h_final = pl.pallas_call(
        rnn_qnet_seq_kernel,
        out_shape=(
            jax.ShapeDtypeStruct((T, B, A), jnp.float32),
            jax.ShapeDtypeStruct((B, H), jnp.float32),
        ),
        grid_spec=pltpu.PrefetchScalarGridSpec(
            num_scalar_prefetch=0,
            grid=grid,
            in_specs=[
                pl.BlockSpec((1, block_b, in_dim), lambda b, t: (t, b, 0)),   # x_seq
                pl.BlockSpec((block_b, H), lambda b, t: (b, 0)),              # h0
                wspec(params["w1t"]), wspec(params["b1"]),
                wspec(params["w_ih_t"]), wspec(params["b_ih"]),
                wspec(params["w_hh_t"]), wspec(params["b_hh"]),
                wspec(params["w2t"]), wspec(params["b2"]),
            ],
            out_specs=(
                pl.BlockSpec((1, block_b, A), lambda b, t: (t, b, 0)),        # q_seq
                pl.BlockSpec((block_b, H), lambda b, t: (b, 0)),              # h_final
            ),
            scratch_shapes=[pltpu.VMEM((block_b, H), jnp.float32)],
        ),
        compiler_params=pltpu.CompilerParams(
            dimension_semantics=("parallel", "arbitrary")),
    )(
        x_seq, h0,
        params["w1t"], params["b1"],
        params["w_ih_t"], params["b_ih"],
        params["w_hh_t"], params["b_hh"],
        params["w2t"], params["b2"],
    )
    return q_seq, h_final


def rnn_qnetwork_forward(states_actions, h, params):
    """Single forward step (matches RNNQNetwork.forward semantics)."""
    q_seq, h_new = rnn_qnetwork_rollout(
        states_actions[None], h, params, block_b=states_actions.shape[0])
    return q_seq[0], h_new


def xavier_uniform(key, out_f, in_f, gain=1.0):
    a = gain * jnp.sqrt(6.0 / (in_f + out_f))
    return jax.random.uniform(key, (out_f, in_f), jnp.float32, -a, a)


def init_params(key, num_inputs, num_actions, hidden_dim):
    in_dim = num_inputs + num_actions
    keys = jax.random.split(key, 6)

    # nn.Linear layers: xavier_uniform weights, zero bias (weights_init)
    w1 = xavier_uniform(keys[0], hidden_dim, in_dim)          # (hidden, in_dim)
    w2 = xavier_uniform(keys[1], num_actions, hidden_dim)     # (actions, hidden)

    # nn.GRUCell default init, uniform(-1/sqrt(H), 1/sqrt(H)); gate order r, z, n.
    k = 1.0 / jnp.sqrt(hidden_dim)
    w_ih = jax.random.uniform(keys[2], (3 * hidden_dim, hidden_dim), jnp.float32, -k, k)
    w_hh = jax.random.uniform(keys[3], (3 * hidden_dim, hidden_dim), jnp.float32, -k, k)
    b_ih = jax.random.uniform(keys[4], (3 * hidden_dim,), jnp.float32, -k, k)
    b_hh = jax.random.uniform(keys[5], (3 * hidden_dim,), jnp.float32, -k, k)

    # Pack: transposed for x @ W; GRU gates kept fused as (H, 3H) / (1, 3H).
    return {
        "w1t": w1.T,                                    # (in_dim, H)
        "b1": jnp.zeros((1, hidden_dim), jnp.float32),
        "w_ih_t": w_ih.T,                               # (H, 3H) cols = [r | z | n]
        "b_ih": b_ih.reshape(1, -1),                    # (1, 3H)
        "w_hh_t": w_hh.T,                               # (H, 3H)
        "b_hh": b_hh.reshape(1, -1),                    # (1, 3H)
        "w2t": w2.T,                                    # (H, A)
        "b2": jnp.zeros((1, num_actions), jnp.float32),
    }


def reference_step(x, h, params):
    H = h.shape[1]
    a = jnp.maximum(x @ params["w1t"] + params["b1"], 0.0)
    gi = a @ params["w_ih_t"] + params["b_ih"]
    gh = h @ params["w_hh_t"] + params["b_hh"]
    r = jax.nn.sigmoid(gi[:, :H] + gh[:, :H])
    z = jax.nn.sigmoid(gi[:, H:2 * H] + gh[:, H:2 * H])
    n = jnp.tanh(gi[:, 2 * H:] + r * gh[:, 2 * H:])
    h_new = (1.0 - z) * n + z * h
    q = h_new @ params["w2t"] + params["b2"]
    return q, h_new


def reference_rollout(x_seq, h0, params):
    def step(h, x):
        q, h_new = reference_step(x, h, params)
        return h_new, q
    h_final, q_seq = jax.lax.scan(step, h0, x_seq)
    return q_seq, h_final


if __name__ == "__main__":
    num_inputs, num_actions, hidden_dim = 24, 8, 32
    batch, seq_len = 16, 8   # batch split into 8-row blocks -> parallel grid axis

    key = jax.random.PRNGKey(0)
    k_param, k_x = jax.random.split(key)
    params = init_params(k_param, num_inputs, num_actions, hidden_dim)

    x_seq = jax.random.normal(
        k_x, (seq_len, batch, num_inputs + num_actions), jnp.float32)
    h0 = jnp.zeros((batch, hidden_dim), jnp.float32)  # GRUCell(x, None) => zeros

    # Multi-step rollout: time loop lives inside a single pallas_call.
    q_seq, h_final = rnn_qnetwork_rollout(x_seq, h0, params, block_b=8)
    jax.block_until_ready((q_seq, h_final))

    q_ref, h_ref = reference_rollout(x_seq, h0, params)
    assert jnp.allclose(q_seq, q_ref, atol=1e-5), "Q mismatch (rollout)"
    assert jnp.allclose(h_final, h_ref, atol=1e-5), "hidden mismatch (rollout)"

    # Single-step API (module.forward equivalent) reuses the same kernel with T=1.
    q1, h1 = rnn_qnetwork_forward(x_seq[0], h0, params)
    q1_ref, h1_ref = reference_step(x_seq[0], h0, params)
    assert jnp.allclose(q1, q1_ref, atol=1e-5), "Q mismatch (single step)"
    assert jnp.allclose(h1, h1_ref, atol=1e-5), "hidden mismatch (single step)"

    print("KERNEL_OK")
</pallas_src>

<mosaic_0001>
module attributes {stable_mosaic.version = 11 : i64} {
  func.func @rnn_qnet_seq_kernel(%arg0: i32, %arg1: i32, %arg2: memref<1x8x32xf32, #tpu.memory_space<vmem>>, %arg3: memref<8x32xf32, #tpu.memory_space<vmem>>, %arg4: memref<32x32xf32, #tpu.memory_space<vmem>>, %arg5: memref<1x32xf32, #tpu.memory_space<vmem>>, %arg6: memref<32x96xf32, #tpu.memory_space<vmem>>, %arg7: memref<1x96xf32, #tpu.memory_space<vmem>>, %arg8: memref<32x96xf32, #tpu.memory_space<vmem>>, %arg9: memref<1x96xf32, #tpu.memory_space<vmem>>, %arg10: memref<32x8xf32, #tpu.memory_space<vmem>>, %arg11: memref<1x8xf32, #tpu.memory_space<vmem>>, %arg12: memref<1x8x8xf32, #tpu.memory_space<vmem>>, %arg13: memref<8x32xf32, #tpu.memory_space<vmem>>, %arg14: memref<8x32xf32, #tpu.memory_space<vmem>>) attributes {dimension_semantics = [#tpu.dimension_semantics<parallel>, #tpu.dimension_semantics<arbitrary>], iteration_bounds = array<i64: 2, 8>, scalar_prefetch = 0 : i64, scratch_operands = 1 : i64, tpu.core_type = #tpu.core_type<tc>, window_params = [{transform_indices = @transform_0, window_bounds = array<i64: 1, 8, 32>}, {transform_indices = @transform_1, window_bounds = array<i64: 8, 32>}, {pipeline_mode = #tpu.pipeline_mode<synchronous>, transform_indices = @transform_2, window_bounds = array<i64: 32, 32>}, {pipeline_mode = #tpu.pipeline_mode<synchronous>, transform_indices = @transform_3, window_bounds = array<i64: 1, 32>}, {pipeline_mode = #tpu.pipeline_mode<synchronous>, transform_indices = @transform_4, window_bounds = array<i64: 32, 96>}, {pipeline_mode = #tpu.pipeline_mode<synchronous>, transform_indices = @transform_5, window_bounds = array<i64: 1, 96>}, {pipeline_mode = #tpu.pipeline_mode<synchronous>, transform_indices = @transform_6, window_bounds = array<i64: 32, 96>}, {pipeline_mode = #tpu.pipeline_mode<synchronous>, transform_indices = @transform_7, window_bounds = array<i64: 1, 96>}, {pipeline_mode = #tpu.pipeline_mode<synchronous>, transform_indices = @transform_8, window_bounds = array<i64: 32, 8>}, {pipeline_mode = #tpu.pipeline_mode<synchronous>, transform_indices = @transform_9, window_bounds = array<i64: 1, 8>}, {transform_indices = @transform_10, window_bounds = array<i64: 1, 8, 8>}, {transform_indices = @transform_11, window_bounds = array<i64: 8, 32>}]} {
    %c0_i32 = arith.constant 0 : i32
    %0 = arith.cmpi eq, %arg1, %c0_i32 : i32
    %1 = arith.extui %0 : i1 to i32
    %c0_i32_0 = arith.constant 0 : i32
    %2 = arith.cmpi ne, %1, %c0_i32_0 : i32
    scf.if %2 {
      %c0_35 = arith.constant 0 : index
      %c0_36 = arith.constant 0 : index
      %59 = vector.load %arg3[%c0_35, %c0_36] : memref<8x32xf32, #tpu.memory_space<vmem>>, vector<8x32xf32>
      %c0_37 = arith.constant 0 : index
      %c0_38 = arith.constant 0 : index
      %60 = vector.load %arg14[%c0_37, %c0_38] : memref<8x32xf32, #tpu.memory_space<vmem>>, vector<8x32xf32>
      tpu.vector_store %arg14[%c0_37, %c0_38], %59 {strides = array<i32>} : memref<8x32xf32, #tpu.memory_space<vmem>>, vector<8x32xf32>,
    } else {
    }
    %c0 = arith.constant 0 : index
    %c0_1 = arith.constant 0 : index
    %c0_2 = arith.constant 0 : index
    %3 = vector.load %arg2[%c0, %c0_1, %c0_2] : memref<1x8x32xf32, #tpu.memory_space<vmem>>, vector<1x8x32xf32>
    %4 = vector.shape_cast %3 : vector<1x8x32xf32> to vector<8x32xf32>
    %c0_3 = arith.constant 0 : index
    %c0_4 = arith.constant 0 : index
    %5 = vector.load %arg14[%c0_3, %c0_4] : memref<8x32xf32, #tpu.memory_space<vmem>>, vector<8x32xf32>
    %c0_5 = arith.constant 0 : index
    %c0_6 = arith.constant 0 : index
    %6 = vector.load %arg4[%c0_5, %c0_6] : memref<32x32xf32, #tpu.memory_space<vmem>>, vector<32x32xf32>
    %cst = arith.constant dense<0.000000e+00> : vector<8x32xf32>
    %7 = tpu.matmul %4, %6, %cst {dimension_numbers = #tpu.dot_dimension_numbers<[1], [0], [0], [1], [0, 0, 1, 1], [], []>} : vector<8x32xf32>, vector<32x32xf32>, vector<8x32xf32> -> vector<8x32xf32>
    %c0_7 = arith.constant 0 : index
    %c0_8 = arith.constant 0 : index
    %8 = vector.load %arg5[%c0_7, %c0_8] : memref<1x32xf32, #tpu.memory_space<vmem>>, vector<1x32xf32>
    %9 = vector.broadcast %8 : vector<1x32xf32> to vector<8x32xf32>
    %10 = arith.addf %7, %9 : vector<8x32xf32>
    %cst_9 = arith.constant 0.000000e+00 : f32
    %11 = vector.broadcast %cst_9 : f32 to vector<8x32xf32>
    %12 = arith.maximumf %10, %11 : vector<8x32xf32>
    %c0_10 = arith.constant 0 : index
    %c0_11 = arith.constant 0 : index
    %13 = vector.load %arg6[%c0_10, %c0_11] : memref<32x96xf32, #tpu.memory_space<vmem>>, vector<32x96xf32>
    %cst_12 = arith.constant dense<0.000000e+00> : vector<8x96xf32>
    %14 = tpu.matmul %12, %13, %cst_12 {dimension_numbers = #tpu.dot_dimension_numbers<[1], [0], [0], [1], [0, 0, 1, 1], [], []>} : vector<8x32xf32>, vector<32x96xf32>, vector<8x96xf32> -> vector<8x96xf32>
    %c0_13 = arith.constant 0 : index
    %c0_14 = arith.constant 0 : index
    %15 = vector.load %arg7[%c0_13, %c0_14] : memref<1x96xf32, #tpu.memory_space<vmem>>, vector<1x96xf32>
    %16 = vector.broadcast %15 : vector<1x96xf32> to vector<8x96xf32>
    %17 = arith.addf %14, %16 : vector<8x96xf32>
    %c0_15 = arith.constant 0 : index
    %c0_16 = arith.constant 0 : index
    %18 = vector.load %arg8[%c0_15, %c0_16] : memref<32x96xf32, #tpu.memory_space<vmem>>, vector<32x96xf32>
    %cst_17 = arith.constant dense<0.000000e+00> : vector<8x96xf32>
    %19 = tpu.matmul %5, %18, %cst_17 {dimension_numbers = #tpu.dot_dimension_numbers<[1], [0], [0], [1], [0, 0, 1, 1], [], []>} : vector<8x32xf32>, vector<32x96xf32>, vector<8x96xf32> -> vector<8x96xf32>
    %c0_18 = arith.constant 0 : index
    %c0_19 = arith.constant 0 : index
    %20 = vector.load %arg9[%c0_18, %c0_19] : memref<1x96xf32, #tpu.memory_space<vmem>>, vector<1x96xf32>
    %21 = vector.broadcast %20 : vector<1x96xf32> to vector<8x96xf32>
    %22 = arith.addf %19, %21 : vector<8x96xf32>
    %23 = vector.extract_strided_slice %17 {offsets = [0, 0], sizes = [8, 32], strides = [1, 1]} : vector<8x96xf32> to vector<8x32xf32>
    %24 = vector.extract_strided_slice %22 {offsets = [0, 0], sizes = [8, 32], strides = [1, 1]} : vector<8x96xf32> to vector<8x32xf32>
    %25 = arith.addf %23, %24 : vector<8x32xf32>
    %26 = arith.negf %25 : vector<8x32xf32>
    %27 = math.exp %26 : vector<8x32xf32>
    %cst_20 = arith.constant 1.000000e+00 : f32
    %28 = vector.broadcast %cst_20 : f32 to vector<8x32xf32>
    %29 = arith.addf %28, %27 : vector<8x32xf32>
    %30 = arith.divf %28, %29 : vector<8x32xf32>
    %31 = vector.extract_strided_slice %17 {offsets = [0, 32], sizes = [8, 32], strides = [1, 1]} : vector<8x96xf32> to vector<8x32xf32>
    %32 = vector.extract_strided_slice %22 {offsets = [0, 32], sizes = [8, 32], strides = [1, 1]} : vector<8x96xf32> to vector<8x32xf32>
    %33 = arith.addf %31, %32 : vector<8x32xf32>
    %34 = arith.negf %33 : vector<8x32xf32>
    %35 = math.exp %34 : vector<8x32xf32>
    %cst_21 = arith.constant 1.000000e+00 : f32
    %36 = vector.broadcast %cst_21 : f32 to vector<8x32xf32>
    %37 = arith.addf %36, %35 : vector<8x32xf32>
    %38 = arith.divf %36, %37 : vector<8x32xf32>
    %39 = vector.extract_strided_slice %17 {offsets = [0, 64], sizes = [8, 32], strides = [1, 1]} : vector<8x96xf32> to vector<8x32xf32>
    %40 = vector.extract_strided_slice %22 {offsets = [0, 64], sizes = [8, 32], strides = [1, 1]} : vector<8x96xf32> to vector<8x32xf32>
    %41 = arith.mulf %30, %40 : vector<8x32xf32>
    %42 = arith.addf %39, %41 : vector<8x32xf32>
    %43 = math.tanh %42 : vector<8x32xf32>
    %cst_22 = arith.constant 1.000000e+00 : f32
    %44 = vector.broadcast %cst_22 : f32 to vector<8x32xf32>
    %45 = arith.subf %44, %38 : vector<8x32xf32>
    %46 = arith.mulf %45, %43 : vector<8x32xf32>
    %47 = arith.mulf %38, %5 : vector<8x32xf32>
    %48 = arith.addf %46, %47 : vector<8x32xf32>
    %c0_23 = arith.constant 0 : index
    %c0_24 = arith.constant 0 : index
    %49 = vector.load %arg14[%c0_23, %c0_24] : memref<8x32xf32, #tpu.memory_space<vmem>>, vector<8x32xf32>
    tpu.vector_store %arg14[%c0_23, %c0_24], %48 {strides = array<i32>} : memref<8x32xf32, #tpu.memory_space<vmem>>, vector<8x32xf32>,
    %c0_25 = arith.constant 0 : index
    %c0_26 = arith.constant 0 : index
    %50 = vector.load %arg13[%c0_25, %c0_26] : memref<8x32xf32, #tpu.memory_space<vmem>>, vector<8x32xf32>
    tpu.vector_store %arg13[%c0_25, %c0_26], %48 {strides = array<i32>} : memref<8x32xf32, #tpu.memory_space<vmem>>, vector<8x32xf32>,
    %c0_27 = arith.constant 0 : index
    %c0_28 = arith.constant 0 : index
    %51 = vector.load %arg10[%c0_27, %c0_28] : memref<32x8xf32, #tpu.memory_space<vmem>>, vector<32x8xf32>
    %cst_29 = arith.constant dense<0.000000e+00> : vector<8x8xf32>
    %52 = tpu.matmul %48, %51, %cst_29 {dimension_numbers = #tpu.dot_dimension_numbers<[1], [0], [0], [1], [0, 0, 1, 1], [], []>} : vector<8x32xf32>, vector<32x8xf32>, vector<8x8xf32> -> vector<8x8xf32>
    %c0_30 = arith.constant 0 : index
    %c0_31 = arith.constant 0 : index
    %53 = vector.load %arg11[%c0_30, %c0_31] : memref<1x8xf32, #tpu.memory_space<vmem>>, vector<1x8xf32>
    %54 = vector.broadcast %53 : vector<1x8xf32> to vector<8x8xf32>
    %55 = arith.addf %52, %54 : vector<8x8xf32>
    %c0_32 = arith.constant 0 : index
    %c0_33 = arith.constant 0 : index
    %c0_34 = arith.constant 0 : index
    %56 = vector.load %arg12[%c0_32, %c0_33, %c0_34] : memref<1x8x8xf32, #tpu.memory_space<vmem>>, vector<1x8x8xf32>
    %57 = vector.shape_cast %56 : vector<1x8x8xf32> to vector<8x8xf32>
    %58 = vector.shape_cast %55 : vector<8x8xf32> to vector<1x8x8xf32>
    tpu.vector_store %arg12[%c0_32, %c0_33, %c0_34], %58 {strides = array<i32>} : memref<1x8x8xf32, #tpu.memory_space<vmem>>, vector<1x8x8xf32>,
    return
  }
  func.func @transform_0(%arg0: i32, %arg1: i32) -> (i32, i32, i32) {
    %c0_i32 = arith.constant 0 : i32
    %c0_i32_0 = arith.constant 0 : i32
    return %arg1, %arg0, %c0_i32 : i32, i32, i32
  }
  func.func @transform_1(%arg0: i32, %arg1: i32) -> (i32, i32) {
    %c0_i32 = arith.constant 0 : i32
    %c0_i32_0 = arith.constant 0 : i32
    return %arg0, %c0_i32 : i32, i32
  }
  func.func @transform_2(%arg0: i32, %arg1: i32) -> (i32, i32) {
    %c0_i32 = arith.constant 0 : i32
    %c0_i32_0 = arith.constant 0 : i32
    %c0_i32_1 = arith.constant 0 : i32
    return %c0_i32, %c0_i32_0 : i32, i32
  }
  func.func @transform_3(%arg0: i32, %arg1: i32) -> (i32, i32) {
    %c0_i32 = arith.constant 0 : i32
    %c0_i32_0 = arith.constant 0 : i32
    %c0_i32_1 = arith.constant 0 : i32
    return %c0_i32, %c0_i32_0 : i32, i32
  }
  func.func @transform_4(%arg0: i32, %arg1: i32) -> (i32, i32) {
    %c0_i32 = arith.constant 0 : i32
    %c0_i32_0 = arith.constant 0 : i32
    %c0_i32_1 = arith.constant 0 : i32
    return %c0_i32, %c0_i32_0 : i32, i32
  }
  func.func @transform_5(%arg0: i32, %arg1: i32) -> (i32, i32) {
    %c0_i32 = arith.constant 0 : i32
    %c0_i32_0 = arith.constant 0 : i32
    %c0_i32_1 = arith.constant 0 : i32
    return %c0_i32, %c0_i32_0 : i32, i32
  }
  func.func @transform_6(%arg0: i32, %arg1: i32) -> (i32, i32) {
    %c0_i32 = arith.constant 0 : i32
    %c0_i32_0 = arith.constant 0 : i32
    %c0_i32_1 = arith.constant 0 : i32
    return %c0_i32, %c0_i32_0 : i32, i32
  }
  func.func @transform_7(%arg0: i32, %arg1: i32) -> (i32, i32) {
    %c0_i32 = arith.constant 0 : i32
    %c0_i32_0 = arith.constant 0 : i32
    %c0_i32_1 = arith.constant 0 : i32
    return %c0_i32, %c0_i32_0 : i32, i32
  }
  func.func @transform_8(%arg0: i32, %arg1: i32) -> (i32, i32) {
    %c0_i32 = arith.constant 0 : i32
    %c0_i32_0 = arith.constant 0 : i32
    %c0_i32_1 = arith.constant 0 : i32
    return %c0_i32, %c0_i32_0 : i32, i32
  }
  func.func @transform_9(%arg0: i32, %arg1: i32) -> (i32, i32) {
    %c0_i32 = arith.constant 0 : i32
    %c0_i32_0 = arith.constant 0 : i32
    %c0_i32_1 = arith.constant 0 : i32
    return %c0_i32, %c0_i32_0 : i32, i32
  }
  func.func @transform_10(%arg0: i32, %arg1: i32) -> (i32, i32, i32) {
    %c0_i32 = arith.constant 0 : i32
    %c0_i32_0 = arith.constant 0 : i32
    return %arg1, %arg0, %c0_i32 : i32, i32, i32
  }
  func.func @transform_11(%arg0: i32, %arg1: i32) -> (i32, i32) {
    %c0_i32 = arith.constant 0 : i32
    %c0_i32_0 = arith.constant 0 : i32
    return %arg0, %c0_i32 : i32, i32
  }
}

</mosaic_0001>

<llo_original>
// kernel: tpu_custom_call.1
$region0: #{tpu_custom_call.1}
  #allocation0 [shape = 'u32[]', space=smem, size = 0x4, offset = 0x4, fixed_abs, tag = 'smem constant byte address 0x4 - core index']
  #allocation1 [shape = 'u32[144,128]{1,0:T(1,128)}', space=vmem, size = 0x12000, scoped, tag = 'internal scratch']
  #allocation2 [shape = 'f32[8,32]{1,0:T(8,128)}', space=vmem, size = 0x1000, scoped, tag = 'scratch operand']
  %s0 = inlined_call_operand.hbm [shape: f32[8,16,32], index: 0, kind: input, shape index: {}]
  %s1 = inlined_call_operand.hbm [shape: f32[16,32], index: 1, kind: input, shape index: {}]
  %s2 = inlined_call_operand.vmem [shape: f32[32,32], index: 2, kind: input, shape index: {}]
  %s3 = inlined_call_operand.vmem [shape: f32[1,32], index: 3, kind: input, shape index: {}]
  %s4 = inlined_call_operand.hbm [shape: f32[32,96], index: 4, kind: input, shape index: {}]
  %s5 = inlined_call_operand.vmem [shape: f32[1,96], index: 5, kind: input, shape index: {}]
  %s6 = inlined_call_operand.hbm [shape: f32[32,96], index: 6, kind: input, shape index: {}]
  %s7 = inlined_call_operand.vmem [shape: f32[1,96], index: 7, kind: input, shape index: {}]
  %s8 = inlined_call_operand.vmem [shape: f32[32,8], index: 8, kind: input, shape index: {}]
  %s9 = inlined_call_operand.vmem [shape: f32[1,8], index: 9, kind: input, shape index: {}]
  %s10 = inlined_call_operand.vmem [shape: f32[8,16,8], index: 10, kind: output, shape index: {0}]
  %s11 = inlined_call_operand.hbm [shape: f32[16,32], index: 11, kind: output, shape index: {1}]
  %12 = xla_tuple %s10, %s11
  %s13 = sld [smem:[#allocation0]]
  $region101: #{tpu_custom_call.1} parent=0
    _
  %s15 = ssub.s32 1, %s13
  %s16 = scalar_select 0, %s15, %s13
  $region1: #{tpu_custom_call.1} parent=0
    #allocation3 [shape = 'u8[8192]{0}', space=vmem, size = 0x2000, scoped, tag = 'input window, operand 0']
    #allocation4 [shape = 's32[2]{0}', space=sflag, size = 0x8, scoped, tag = 'scoped memory for tpu_custom_call.1']
    #allocation5 [shape = 's32[2]{0}', space=sflag, size = 0x8, scoped, tag = 'scoped memory for tpu_custom_call.1']
    #allocation6 [shape = 'u8[8192]{0}', space=vmem, size = 0x2000, scoped, tag = 'input window, operand 1']
    #allocation7 [shape = 's32[2]{0}', space=sflag, size = 0x8, scoped, tag = 'scoped memory for tpu_custom_call.1']
    #allocation8 [shape = 'u8[16384]{0}', space=vmem, size = 0x4000, scoped, tag = 'input window, operand 4, single buffered']
    #allocation9 [shape = 'u8[16384]{0}', space=vmem, size = 0x4000, scoped, tag = 'input window, operand 6, single buffered']
    #allocation10 [shape = 's32[1]{0}', space=sflag, size = 0x4, scoped, tag = 'scoped memory for tpu_custom_call.1']
    #allocation11 [shape = 'u8[8192]{0}', space=vmem, size = 0x2000, scoped, tag = 'output window, operand 1']
    %17 = vsyncpa [#allocation4], 0
    %s18 = scalar_lea.sflag [#allocation4], 1
    %19 = vsyncpa %s18, 0
    %20 = vsyncpa [#allocation7], 0
    %s21 = scalar_lea.sflag [#allocation7], 1
    %22 = vsyncpa %s21, 0
    %23 = vsyncpa [#allocation10], 0
    %24 = vsyncpa [#allocation5], 0
    %s25 = scalar_lea.sflag [#allocation5], 1
    %26 = vsyncpa %s25, 0
    loop: start=0, step=1, limit=18
    $region2: #{tpu_custom_call.1} parent=1 // loop_pre_header
      _
    $region3: #{tpu_custom_call.1} parent=1 // loop_header
      %s28 = sphi 0, %s32
      %p29 = scmp.ge.s32.totalorder %s28, 18
      %s35 = sphi 0, %s47
      %s36 = sphi 0, %s43
      %s37 = sphi 0, %s35
      %s38 = sphi 0, %s36
      %s39 = sphi 0, %s37
      %s40 = sphi 0, %s38
      %s52 = sphi 0, %s54
      %s55 = sphi 0, %s52
      %s56 = sphi 0, %s55
      %s72 = sphi 0, %s56
      %s78 = sphi 0, %s80
      %s81 = sphi 0, %s78
      %s82 = sphi 0, %s81
      %s98 = sphi 0, %s82
      %s102 = sphi 0, %s102
      %s104 = sphi 0, %s102
      %s105 = sphi 0, %s104
      %s119 = sphi 0, %s105
      %s123 = sphi 0, %s123
      %s125 = sphi 0, %s123
      %s126 = sphi 0, %s125
      %s140 = sphi 0, %s126
      %s144 = sphi 0, %s144
      %s146 = sphi 0, %s144
      %s147 = sphi 0, %s146
      %s161 = sphi 0, %s147
      %s165 = sphi 0, %s165
      %s167 = sphi 0, %s165
      %s168 = sphi 0, %s167
      %s182 = sphi 0, %s168
      %s186 = sphi 0, %s186
      %s188 = sphi 0, %s186
      %s189 = sphi 0, %s188
      %s203 = sphi 0, %s189
      %s207 = sphi 0, %s207
      %s209 = sphi 0, %s207
      %s210 = sphi 0, %s209
      %s224 = sphi 0, %s210
      %s228 = sphi 0, %s228
      %s230 = sphi 0, %s228
      %s231 = sphi 0, %s230
      %s245 = sphi 0, %s231
      %s249 = sphi 0, %s249
      %s251 = sphi 0, %s249
      %s252 = sphi 0, %s251
      %s266 = sphi 0, %s252
      %s274 = sphi 0, %s276
      %s277 = sphi 0, %s274
      %s278 = sphi 0, %s277
      %s294 = sphi 0, %s278
      %s300 = sphi 0, %s302
      %s303 = sphi 0, %s300
      %s304 = sphi 0, %s303
      %s320 = sphi 0, %s304
    $region4: #{tpu_custom_call.1} parent=1 // loop_header_branch
      %31 = sbr.rel (%p29) target = $region8
    $region5: #{tpu_custom_call.1} parent=1 // loop_body
      %s33 = ssub.s32 %s28, 1
      %s34 = ssub.s32 %s28, 2
      %s41 = sadd.s32 1, %s36
      %p42 = scmp.ge.s32.totalorder %s41, 8
      %s43 = scalar_select %p42, 0, %s41
      %s44 = sadd.s32 1, %s35
      %s45 = scalar_select %p42, %s44, %s35
      %p46 = scmp.ge.s32.totalorder %s45, 2
      %s47 = scalar_select %p46, 0, %s45
      %s48 = ssub.s32 %s36, %s43
      %s49 = ssub.s32 %s35, %s47
      %s50 = sor.u32 %s48, %s49
      %p51 = scmp.eq.s32.totalorder %s50, 0
      %s53 = sadd.s32 %s52, 1
      %s54 = scalar_select %p51, %s52, %s53
      %p57 = pneg %p51
      %p58 = scmp.eq.s32.totalorder %s28, 15
      %p59 = por %p57, %p58
      %p60 = scmp.ne.s32.totalorder %s52, %s55
      %p61 = scmp.eq.s32.totalorder %s28, 0
      %p62 = por %p60, %p61
      %p63 = scmp.ne.s32.totalorder %s52, %s55
      %p64 = scmp.eq.s32.totalorder %s33, 15
      %p65 = por %p63, %p64
      %p66 = scmp.ne.s32.totalorder %s55, %s56
      %p67 = scmp.eq.s32.totalorder %s33, 0
      %p68 = por %p66, %p67
      %p69 = scmp.ne.s32.totalorder %s55, %s56
      %p70 = scmp.eq.s32.totalorder %s34, 15
      %p71 = por %p69, %p70
      %p73 = scmp.ne.s32.totalorder %s56, %s72
      %p74 = scmp.eq.s32.totalorder %s34, 0
      %p75 = por %p73, %p74
      %s76 = ssub.s32 %s35, %s47
      %p77 = scmp.eq.s32.totalorder %s76, 0
      %s79 = sadd.s32 %s78, 1
      %s80 = scalar_select %p77, %s78, %s79
      %p83 = pneg %p77
      %p84 = scmp.eq.s32.totalorder %s28, 15
      %p85 = por %p83, %p84
      %p86 = scmp.ne.s32.totalorder %s78, %s81
      %p87 = scmp.eq.s32.totalorder %s28, 0
      %p88 = por %p86, %p87
      %p89 = scmp.ne.s32.totalorder %s78, %s81
      %p90 = scmp.eq.s32.totalorder %s33, 15
      %p91 = por %p89, %p90
      %p92 = scmp.ne.s32.totalorder %s81, %s82
      %p93 = scmp.eq.s32.totalorder %s33, 0
      %p94 = por %p92, %p93
      %p95 = scmp.ne.s32.totalorder %s81, %s82
      %p96 = scmp.eq.s32.totalorder %s34, 15
      %p97 = por %p95, %p96
      %p99 = scmp.ne.s32.totalorder %s82, %s98
      %p100 = scmp.eq.s32.totalorder %s34, 0
      %p101 = por %p99, %p100
      %s103 = sadd.s32 %s102, 1
      %p106 = scmp.eq.s32.totalorder %s28, 15
      %p107 = scmp.ne.s32.totalorder %s102, %s104
      %p108 = scmp.eq.s32.totalorder %s28, 0
      %p109 = por %p107, %p108
      %p110 = scmp.ne.s32.totalorder %s102, %s104
      %p111 = scmp.eq.s32.totalorder %s33, 15
      %p112 = por %p110, %p111
      %p113 = scmp.ne.s32.totalorder %s104, %s105
      %p114 = scmp.eq.s32.totalorder %s33, 0
      %p115 = por %p113, %p114
      %p116 = scmp.ne.s32.totalorder %s104, %s105
      %p117 = scmp.eq.s32.totalorder %s34, 15
      %p118 = por %p116, %p117
      %p120 = scmp.ne.s32.totalorder %s105, %s119
      %p121 = scmp.eq.s32.totalorder %s34, 0
      %p122 = por %p120, %p121
      %s124 = sadd.s32 %s123, 1
      %p127 = scmp.eq.s32.totalorder %s28, 15
      %p128 = scmp.ne.s32.totalorder %s123, %s125
      %p129 = scmp.eq.s32.totalorder %s28, 0
      %p130 = por %p128, %p129
      %p131 = scmp.ne.s32.totalorder %s123, %s125
      %p132 = scmp.eq.s32.totalorder %s33, 15
      %p133 = por %p131, %p132
      %p134 = scmp.ne.s32.totalorder %s125, %s126
      %p135 = scmp.eq.s32.totalorder %s33, 0
      %p136 = por %p134, %p135
      %p137 = scmp.ne.s32.totalorder %s125, %s126
      %p138 = scmp.eq.s32.totalorder %s34, 15
      %p139 = por %p137, %p138
      %p141 = scmp.ne.s32.totalorder %s126, %s140
      %p142 = scmp.eq.s32.totalorder %s34, 0
      %p143 = por %p141, %p142
      %s145 = sadd.s32 %s144, 1
      %p148 = scmp.eq.s32.totalorder %s28, 15
      %p149 = scmp.ne.s32.totalorder %s144, %s146
      %p150 = scmp.eq.s32.totalorder %s28, 0
      %p151 = por %p149, %p150
      %p152 = scmp.ne.s32.totalorder %s144, %s146
      %p153 = scmp.eq.s32.totalorder %s33, 15
      %p154 = por %p152, %p153
      %p155 = scmp.ne.s32.totalorder %s146, %s147
      %p156 = scmp.eq.s32.totalorder %s33, 0
      %p157 = por %p155, %p156
      %p158 = scmp.ne.s32.totalorder %s146, %s147
      %p159 = scmp.eq.s32.totalorder %s34, 15
      %p160 = por %p158, %p159
      %p162 = scmp.ne.s32.totalorder %s147, %s161
      %p163 = scmp.eq.s32.totalorder %s34, 0
      %p164 = por %p162, %p163
      %s166 = sadd.s32 %s165, 1
      %p169 = scmp.eq.s32.totalorder %s28, 15
      %p170 = scmp.ne.s32.totalorder %s165, %s167
      %p171 = scmp.eq.s32.totalorder %s28, 0
      %p172 = por %p170, %p171
      %p173 = scmp.ne.s32.totalorder %s165, %s167
      %p174 = scmp.eq.s32.totalorder %s33, 15
      %p175 = por %p173, %p174
      %p176 = scmp.ne.s32.totalorder %s167, %s168
      %p177 = scmp.eq.s32.totalorder %s33, 0
      %p178 = por %p176, %p177
      %p179 = scmp.ne.s32.totalorder %s167, %s168
      %p180 = scmp.eq.s32.totalorder %s34, 15
      %p181 = por %p179, %p180
      %p183 = scmp.ne.s32.totalorder %s168, %s182
      %p184 = scmp.eq.s32.totalorder %s34, 0
      %p185 = por %p183, %p184
      %s187 = sadd.s32 %s186, 1
      %p190 = scmp.eq.s32.totalorder %s28, 15
      %p191 = scmp.ne.s32.totalorder %s186, %s188
      %p192 = scmp.eq.s32.totalorder %s28, 0
      %p193 = por %p191, %p192
      %p194 = scmp.ne.s32.totalorder %s186, %s188
      %p195 = scmp.eq.s32.totalorder %s33, 15
      %p196 = por %p194, %p195
      %p197 = scmp.ne.s32.totalorder %s188, %s189
      %p198 = scmp.eq.s32.totalorder %s33, 0
      %p199 = por %p197, %p198
      %p200 = scmp.ne.s32.totalorder %s188, %s189
      %p201 = scmp.eq.s32.totalorder %s34, 15
      %p202 = por %p200, %p201
      %p204 = scmp.ne.s32.totalorder %s189, %s203
      %p205 = scmp.eq.s32.totalorder %s34, 0
      %p206 = por %p204, %p205
      %s208 = sadd.s32 %s207, 1
      %p211 = scmp.eq.s32.totalorder %s28, 15
      %p212 = scmp.ne.s32.totalorder %s207, %s209
      %p213 = scmp.eq.s32.totalorder %s28, 0
      %p214 = por %p212, %p213
      %p215 = scmp.ne.s32.totalorder %s207, %s209
      %p216 = scmp.eq.s32.totalorder %s33, 15
      %p217 = por %p215, %p216
      %p218 = scmp.ne.s32.totalorder %s209, %s210
      %p219 = scmp.eq.s32.totalorder %s33, 0
      %p220 = por %p218, %p219
      %p221 = scmp.ne.s32.totalorder %s209, %s210
      %p222 = scmp.eq.s32.totalorder %s34, 15
      %p223 = por %p221, %p222
      %p225 = scmp.ne.s32.totalorder %s210, %s224
      %p226 = scmp.eq.s32.totalorder %s34, 0
      %p227 = por %p225, %p226
      %s229 = sadd.s32 %s228, 1
      %p232 = scmp.eq.s32.totalorder %s28, 15
      %p233 = scmp.ne.s32.totalorder %s228, %s230
      %p234 = scmp.eq.s32.totalorder %s28, 0
      %p235 = por %p233, %p234
      %p236 = scmp.ne.s32.totalorder %s228, %s230
      %p237 = scmp.eq.s32.totalorder %s33, 15
      %p238 = por %p236, %p237
      %p239 = scmp.ne.s32.totalorder %s230, %s231
      %p240 = scmp.eq.s32.totalorder %s33, 0
      %p241 = por %p239, %p240
      %p242 = scmp.ne.s32.totalorder %s230, %s231
      %p243 = scmp.eq.s32.totalorder %s34, 15
      %p244 = por %p242, %p243
      %p246 = scmp.ne.s32.totalorder %s231, %s245
      %p247 = scmp.eq.s32.totalorder %s34, 0
      %p248 = por %p246, %p247
      %s250 = sadd.s32 %s249, 1
      %p253 = scmp.eq.s32.totalorder %s28, 15
      %p254 = scmp.ne.s32.totalorder %s249, %s251
      %p255 = scmp.eq.s32.totalorder %s28, 0
      %p256 = por %p254, %p255
      %p257 = scmp.ne.s32.totalorder %s249, %s251
      %p258 = scmp.eq.s32.totalorder %s33, 15
      %p259 = por %p257, %p258
      %p260 = scmp.ne.s32.totalorder %s251, %s252
      %p261 = scmp.eq.s32.totalorder %s33, 0
      %p262 = por %p260, %p261
      %p263 = scmp.ne.s32.totalorder %s251, %s252
      %p264 = scmp.eq.s32.totalorder %s34, 15
      %p265 = por %p263, %p264
      %p267 = scmp.ne.s32.totalorder %s252, %s266
      %p268 = scmp.eq.s32.totalorder %s34, 0
      %p269 = por %p267, %p268
      %s270 = ssub.s32 %s36, %s43
      %s271 = ssub.s32 %s35, %s47
      %s272 = sor.u32 %s270, %s271
      %p273 = scmp.eq.s32.totalorder %s272, 0
      %s275 = sadd.s32 %s274, 1
      %s276 = scalar_select %p273, %s274, %s275
      %p279 = pneg %p273
      %p280 = scmp.eq.s32.totalorder %s28, 15
      %p281 = por %p279, %p280
      %p282 = scmp.ne.s32.totalorder %s274, %s277
      %p283 = scmp.eq.s32.totalorder %s28, 0
      %p284 = por %p282, %p283
      %p285 = scmp.ne.s32.totalorder %s274, %s277
      %p286 = scmp.eq.s32.totalorder %s33, 15
      %p287 = por %p285, %p286
      %p288 = scmp.ne.s32.totalorder %s277, %s278
      %p289 = scmp.eq.s32.totalorder %s33, 0
      %p290 = por %p288, %p289
      %p291 = scmp.ne.s32.totalorder %s277, %s278
      %p292 = scmp.eq.s32.totalorder %s34, 15
      %p293 = por %p291, %p292
      %p295 = scmp.ne.s32.totalorder %s278, %s294
      %p296 = scmp.eq.s32.totalorder %s34, 0
      %p297 = por %p295, %p296
      %s298 = ssub.s32 %s35, %s47
      %p299 = scmp.eq.s32.totalorder %s298, 0
      %s301 = sadd.s32 %s300, 1
      %s302 = scalar_select %p299, %s300, %s301
      %p305 = pneg %p299
      %p306 = scmp.eq.s32.totalorder %s28, 15
      %p307 = por %p305, %p306
      %p308 = scmp.ne.s32.totalorder %s300, %s303
      %p309 = scmp.eq.s32.totalorder %s28, 0
      %p310 = por %p308, %p309
      %p311 = scmp.ne.s32.totalorder %s300, %s303
      %p312 = scmp.eq.s32.totalorder %s33, 15
      %p313 = por %p311, %p312
      %p314 = scmp.ne.s32.totalorder %s303, %s304
      %p315 = scmp.eq.s32.totalorder %s33, 0
      %p316 = por %p314, %p315
      %p317 = scmp.ne.s32.totalorder %s303, %s304
      %p318 = scmp.eq.s32.totalorder %s34, 15
      %p319 = por %p317, %p318
      %p321 = scmp.ne.s32.totalorder %s304, %s320
      %p322 = scmp.eq.s32.totalorder %s34, 0
      %p323 = por %p321, %p322
      %p324 = scmp.le.s32.totalorder 1, %s28
      %p325 = scmp.lt.s32.totalorder %s28, 17
      %p326 = pnand %p324, %p325
      %p327 = pneg %p326
      // Predicated region
      $region9: #{tpu_custom_call.1} parent=5 // pred_check
        _
      $region10: #{tpu_custom_call.1} parent=5 // pred_check_branch
        %329 = sbr.rel (%p326) target = $region12
      $region11: #{tpu_custom_call.1} parent=5 // pred_region
        %s330 = ssub.s32 %s28, 1
        // Predicated region
        $region13: #{tpu_custom_call.1} parent=11 // pred_check
          %p331 = pneg %p115
        $region14: #{tpu_custom_call.1} parent=11 // pred_check_branch
          %333 = sbr.rel (%p331) target = $region16
        $region15: #{tpu_custom_call.1} parent=11 // pred_region
          _
        $region16: #{tpu_custom_call.1} parent=11 // pred_fallthru
          _
        // Predicated region
        $region17: #{tpu_custom_call.1} parent=11 // pred_check
          %p334 = pneg %p136
        $region18: #{tpu_custom_call.1} parent=11 // pred_check_branch
          %336 = sbr.rel (%p334) target = $region20
        $region19: #{tpu_custom_call.1} parent=11 // pred_region
          _
        $region20: #{tpu_custom_call.1} parent=11 // pred_fallthru
          _
        // Predicated region
        $region21: #{tpu_custom_call.1} parent=11 // pred_check
          %p337 = pneg %p157
        $region22: #{tpu_custom_call.1} parent=11 // pred_check_branch
          %339 = sbr.rel (%p337) target = $region24
        $region23: #{tpu_custom_call.1} parent=11 // pred_region
          %s341 = ssub.s32 512, 512
          %342 = vsyncadd [#allocation7], %s341
          %s343 = sshll.u32 [#allocation8], 4
          %s344 = int_to_ptr.vmem [resolvable:$true] %s343
          %349 = dma.hbm_to_vmem [thread:$0]  %s4, 512, %s344, [#allocation7], 128, 128, 8
        $region24: #{tpu_custom_call.1} parent=11 // pred_fallthru
          _
        // Predicated region
        $region25: #{tpu_custom_call.1} parent=11 // pred_check
          %p350 = pneg %p178
        $region26: #{tpu_custom_call.1} parent=11 // pred_check_branch
          %352 = sbr.rel (%p350) target = $region28
        $region27: #{tpu_custom_call.1} parent=11 // pred_region
          _
        $region28: #{tpu_custom_call.1} parent=11 // pred_fallthru
          _
        // Predicated region
        $region29: #{tpu_custom_call.1} parent=11 // pred_check
          %p353 = pneg %p199
        $region30: #{tpu_custom_call.1} parent=11 // pred_check_branch
          %355 = sbr.rel (%p353) target = $region32
        $region31: #{tpu_custom_call.1} parent=11 // pred_region
          %s357 = ssub.s32 512, 512
          %358 = vsyncadd [#allocation10], %s357
          %s359 = sshll.u32 [#allocation9], 4
          %s360 = int_to_ptr.vmem [resolvable:$true] %s359
          %365 = dma.hbm_to_vmem [thread:$0]  %s6, 512, %s360, [#allocation10], 128, 128, 8
        $region32: #{tpu_custom_call.1} parent=11 // pred_fallthru
          _
        // Predicated region
        $region33: #{tpu_custom_call.1} parent=11 // pred_check
          %p366 = pneg %p220
        $region34: #{tpu_custom_call.1} parent=11 // pred_check_branch
          %368 = sbr.rel (%p366) target = $region36
        $region35: #{tpu_custom_call.1} parent=11 // pred_region
          _
        $region36: #{tpu_custom_call.1} parent=11 // pred_fallthru
          _
        // Predicated region
        $region37: #{tpu_custom_call.1} parent=11 // pred_check
          %p369 = pneg %p241
        $region38: #{tpu_custom_call.1} parent=11 // pred_check_branch
          %371 = sbr.rel (%p369) target = $region40
        $region39: #{tpu_custom_call.1} parent=11 // pred_region
          _
        $region40: #{tpu_custom_call.1} parent=11 // pred_fallthru
          _
        // Predicated region
        $region41: #{tpu_custom_call.1} parent=11 // pred_check
          %p372 = pneg %p262
        $region42: #{tpu_custom_call.1} parent=11 // pred_check_branch
          %374 = sbr.rel (%p372) target = $region44
        $region43: #{tpu_custom_call.1} parent=11 // pred_region
          _
        $region44: #{tpu_custom_call.1} parent=11 // pred_fallthru
          _
      $region12: #{tpu_custom_call.1} parent=5 // pred_fallthru
        _
      %p375 = scmp.lt.s32.totalorder %s28, 16
      // Predicated region
      $region45: #{tpu_custom_call.1} parent=5 // pred_check
        %p376 = pneg %p375
      $region46: #{tpu_custom_call.1} parent=5 // pred_check_branch
        %378 = sbr.rel (%p376) target = $region48
      $region47: #{tpu_custom_call.1} parent=5 // pred_region
        // Predicated region
        $region49: #{tpu_custom_call.1} parent=47 // pred_check
          %p379 = pneg %p62
        $region50: #{tpu_custom_call.1} parent=47 // pred_check_branch
          %381 = sbr.rel (%p379) target = $region52
        $region51: #{tpu_custom_call.1} parent=47 // pred_region
          %s382 = sand.u32 %s52, 1
          %s383 = scalar_lea.sflag [#allocation4], %s382
          %s384 = sand.u32 %s52, 1
          %s385 = smul.addr %s384, 8
          %s386 = scalar_lea.vmem [#allocation3], %s385
          %s388 = ssub.s32 128, 128
          %389 = vsyncadd %s383, %s388
          %s390 = smul.addr %s36, 2
          %s391 = sadd.s32 %s35, %s390
          %s392 = smul.addr %s391, 128
          %s393 = scalar_lea.hbm %s0, %s392
          %s395 = sshll.u32 %s386, 4
          %s396 = int_to_ptr.vmem [resolvable:$true] %s395
          %398 = dma.hbm_to_vmem [thread:$0]  %s393, 128, %s396, %s383
        $region52: #{tpu_custom_call.1} parent=47 // pred_fallthru
          _
        // Predicated region
        $region53: #{tpu_custom_call.1} parent=47 // pred_check
          %p399 = pneg %p88
        $region54: #{tpu_custom_call.1} parent=47 // pred_check_branch
          %401 = sbr.rel (%p399) target = $region56
        $region55: #{tpu_custom_call.1} parent=47 // pred_region
          %s402 = sand.u32 %s28, 1
          %s403 = scalar_lea.sflag [#allocation7], %s402
          %s404 = sand.u32 %s78, 1
          %s405 = smul.addr %s404, 8
          %s406 = scalar_lea.vmem [#allocation6], %s405
          %s408 = ssub.s32 128, 128
          %409 = vsyncadd %s403, %s408
          %s410 = smul.addr %s35, 128
          %s411 = scalar_lea.hbm %s1, %s410
          %s413 = sshll.u32 %s406, 4
          %s414 = int_to_ptr.vmem [resolvable:$true] %s413
          %416 = dma.hbm_to_vmem [thread:$0]  %s411, 128, %s414, %s403
        $region56: #{tpu_custom_call.1} parent=47 // pred_fallthru
          _
      $region48: #{tpu_custom_call.1} parent=5 // pred_fallthru
        _
      %p417 = scmp.le.s32.totalorder 1, %s28
      %p418 = scmp.lt.s32.totalorder %s28, 17
      %p419 = pnand %p417, %p418
      %p420 = pneg %p419
      // Predicated region
      $region57: #{tpu_custom_call.1} parent=5 // pred_check
        _
      $region58: #{tpu_custom_call.1} parent=5 // pred_check_branch
        %422 = sbr.rel (%p419) target = $region60
      $region59: #{tpu_custom_call.1} parent=5 // pred_region
        %s423 = ssub.s32 %s28, 1
        %s424 = sand.u32 %s55, 1
        %s425 = scalar_lea.sflag [#allocation4], %s424
        %s426 = sand.u32 %s55, 1
        %s427 = smul.addr %s426, 8
        %s428 = scalar_lea.vmem [#allocation3], %s427
        // Predicated region
        $region61: #{tpu_custom_call.1} parent=59 // pred_check
          %p429 = pneg %p68
        $region62: #{tpu_custom_call.1} parent=59 // pred_check_branch
          %431 = sbr.rel (%p429) target = $region64
        $region63: #{tpu_custom_call.1} parent=59 // pred_region
          %432 = dma.done %s425, 128
        $region64: #{tpu_custom_call.1} parent=59 // pred_fallthru
          _
        %s433 = sand.u32 %s33, 1
        %s434 = scalar_lea.sflag [#allocation7], %s433
        %s435 = sand.u32 %s81, 1
        %s436 = smul.addr %s435, 8
        %s437 = scalar_lea.vmem [#allocation6], %s436
        // Predicated region
        $region65: #{tpu_custom_call.1} parent=59 // pred_check
          %p438 = pneg %p94
        $region66: #{tpu_custom_call.1} parent=59 // pred_check_branch
          %440 = sbr.rel (%p438) target = $region68
        $region67: #{tpu_custom_call.1} parent=59 // pred_region
          %441 = dma.done %s434, 128
        $region68: #{tpu_custom_call.1} parent=59 // pred_fallthru
          _
        // Predicated region
        $region69: #{tpu_custom_call.1} parent=59 // pred_check
          %p442 = pneg %p157
        $region70: #{tpu_custom_call.1} parent=59 // pred_check_branch
          %444 = sbr.rel (%p442) target = $region72
        $region71: #{tpu_custom_call.1} parent=59 // pred_region
          %445 = dma.done [#allocation7], 512
        $region72: #{tpu_custom_call.1} parent=59 // pred_fallthru
          _
        // Predicated region
        $region73: #{tpu_custom_call.1} parent=59 // pred_check
          %p446 = pneg %p199
        $region74: #{tpu_custom_call.1} parent=59 // pred_check_branch
          %448 = sbr.rel (%p446) target = $region76
        $region75: #{tpu_custom_call.1} parent=59 // pred_region
          %449 = dma.done [#allocation10], 512
        $region76: #{tpu_custom_call.1} parent=59 // pred_fallthru
          _
        %s450 = sand.u32 %s55, 1
        %s451 = scalar_lea.sflag [#allocation4], %s450
        %s452 = sand.u32 %s55, 1
        %s453 = smul.addr %s452, 8
        %s454 = scalar_lea.vmem [#allocation3], %s453
        %p455 = pneg %p68
        %p456 = pneg %p65
        %s457 = sand.u32 %s33, 1
        %s458 = scalar_lea.sflag [#allocation7], %s457
        %s459 = sand.u32 %s81, 1
        %s460 = smul.addr %s459, 8
        %s461 = scalar_lea.vmem [#allocation6], %s460
        %p462 = pneg %p94
        %p463 = pneg %p91
        %p464 = pneg %p115
        %p465 = pneg %p112
        %p466 = pneg %p136
        %p467 = pneg %p133
        %p468 = pneg %p157
        %p469 = pneg %p154
        %p470 = pneg %p178
        %p471 = pneg %p175
        %p472 = pneg %p199
        %p473 = pneg %p196
        %p474 = pneg %p220
        %p475 = pneg %p217
        %p476 = pneg %p241
        %p477 = pneg %p238
        %p478 = pneg %p262
        %p479 = pneg %p259
        %p480 = pneg %p290
        %p481 = pneg %p287
        %p482 = scmp.lt.s32.totalorder %s38, 7
        %s483 = scalar_select %p482, %s38, 7
        %p484 = scmp.lt.s32.totalorder %s37, 1
        %s485 = scalar_select %p484, %s37, 1
        %s486 = smul.addr %s483, 2
        %s487 = sadd.s32 %s485, %s486
        %s488 = smul.addr %s487, 8
        %s489 = scalar_lea.vmem %s10, %s488
        %p490 = pneg %p316
        %p491 = pneg %p313
        %s492 = sand.u32 %s303, 1
        %s493 = scalar_lea.sflag [#allocation5], %s492
        %s494 = sand.u32 %s303, 1
        %s495 = smul.addr %s494, 8
        %s496 = scalar_lea.vmem [#allocation11], %s495
        %p497 = scmp.lt.s32.totalorder %s38, 7
        %s498 = scalar_select %p497, %s38, 7
        %p499 = scmp.lt.s32.totalorder %s37, 1
        %s500 = scalar_select %p499, %s37, 1
        %s501 = smul.addr %s498, 2
        %s502 = sadd.s32 %s500, %s501
        %s503 = smul.addr %s502, 8
        %s504 = scalar_lea.vmem %s10, %s503
        %p505 = scmp.eq.s32.totalorder %s38, 0
        // Predicated region
        $region77: #{tpu_custom_call.1} parent=59 // pred_check
          %p506 = pneg %p505
        $region78: #{tpu_custom_call.1} parent=59 // pred_check_branch
          %508 = sbr.rel (%p506) target = $region80
        $region79: #{tpu_custom_call.1} parent=59 // pred_region
          %v509 = vld [vmem:[%s437] sm:$0xff]
          %vm510 = vcmask 261120
          %511 = vst.msk [vmem:[#allocation2] sm:$0xff] %vm510, %v509
        $region80: #{tpu_custom_call.1} parent=59 // pred_fallthru
          _
        %v512 = vld [vmem:[%s428] sm:$0xff]
        %v513 = vld [vmem:[#allocation2] sm:$0xff]
        %v514 = vld [vmem:[%s2] sm:$0xff]
        %v515 = vld [vmem:[%s2 + $0x8] sm:$0xff]
        %v516 = vld [vmem:[%s2 + $0x10] sm:$0xff]
        %v517 = vld [vmem:[%s2 + $0x18] sm:$0xff]
        %v518 = vld [vmem:[%s3] sm:$0x1]
        %v520 = vlaneseq
        %v521 = vshrl.u32 %v520, 7
        %v522 = vsub.s32 0, %v521
        %v523 = vrot.slane %v518, %v522
        %vm525 = vcmask 261120
        %v527 = vsel %vm525, %v512, 0
        %529 = vmatprep.subr.mxu0 0.0
        %530 = vmatpush1.msra.mxu0 %v514
        %531 = vmatprep.subr.mxu0 0.0
        %532 = vmatpush1.msra.mxu0 %v515
        %533 = vmatprep.subr.mxu0 0.0
        %534 = vmatpush1.msra.mxu0 %v516
        %535 = vmatprep.subr.mxu0 0.0
        %536 = vmatpush1.msra.mxu0 %v517
        %537 = vmatprep.subr.mxu0 0.0
        %538 = vmatpush1.msra.mxu0 0.0
        %539 = vmatprep.subr.mxu0 0.0
        %540 = vmatpush1.msra.mxu0 0.0
        %541 = vmatprep.subr.mxu0 0.0
        %542 = vmatpush1.msra.mxu0 0.0
        %543 = vmatprep.subr.mxu0 0.0
        %544 = vmatpush1.msra.mxu0 0.0
        %545 = vmatprep.subr.mxu0 0.0
        %546 = vmatpush1.msra.mxu0 0.0
        %547 = vmatprep.subr.mxu0 0.0
        %548 = vmatpush1.msra.mxu0 0.0
        %549 = vmatprep.subr.mxu0 0.0
        %550 = vmatpush1.msra.mxu0 0.0
        %551 = vmatprep.subr.mxu0 0.0
        %552 = vmatpush1.msra.mxu0 0.0
        %553 = vmatprep.subr.mxu0 0.0
        %554 = vmatpush1.msra.mxu0 0.0
        %555 = vmatprep.subr.mxu0 0.0
        %556 = vmatpush1.msra.mxu0 0.0
        %557 = vmatprep.subr.mxu0 0.0
        %558 = vmatpush1.msra.mxu0 0.0
        %559 = vmatprep.subr.mxu0 0.0
        %560 = vmatpush1.msra.mxu0 0.0
        %561 = vmatprep.subr.mxu0 0.0
        %562 = vmatpush1.msra.mxu0 0.0
        %563 = vmatprep.subr.mxu0 0.0
        %564 = vmatpush1.msra.mxu0 0.0
        %565 = vmatprep.subr.mxu0 0.0
        %566 = vmatpush1.msra.mxu0 0.0
        %567 = vmatprep.subr.mxu0 0.0
        %568 = vmatpush1.msra.mxu0 0.0
        %569 = vmatprep.subr.mxu0 0.0
        %570 = vmatpush1.msra.mxu0 0.0
        %571 = vmatprep.subr.mxu0 0.0
        %572 = vmatpush1.msra.mxu0 0.0
        %573 = vmatprep.subr.mxu0 0.0
        %574 = vmatpush1.msra.mxu0 0.0
        %575 = vmatprep.subr.mxu0 0.0
        %576 = vmatpush1.msra.mxu0 0.0
        %577 = vmatprep.subr.mxu0 0.0
        %578 = vmatpush1.msra.mxu0 0.0
        %579 = vmatprep.subr.mxu0 0.0
        %580 = vmatpush1.msra.mxu0 0.0
        %581 = vmatprep.subr.mxu0 0.0
        %582 = vmatpush1.msra.mxu0 0.0
        %583 = vmatprep.subr.mxu0 0.0
        %584 = vmatpush1.msra.mxu0 0.0
        %585 = vmatprep.subr.mxu0 0.0
        %586 = vmatpush1.msra.mxu0 0.0
        %587 = vmatprep.subr.mxu0 0.0
        %588 = vmatpush1.msra.mxu0 0.0
        %589 = vmatprep.subr.mxu0 0.0
        %590 = vmatpush1.msra.mxu0 0.0
        %591 = vmatprep.subr.mxu0 0.0
        %592 = vmatpush1.msra.mxu0 0.0
        %593 = vmatprep.mubr.f32.mxu0 0.0
        %594 = vmatmul.mubr.f32.gmra.mrb[0].mxu0 %v527
        %v595 = vpop.f32.mrb[0].mxu0
        %v596 = vadd.f32 %v523, %v595
        %v597 = vpop.f32.mrb[0].mxu0
        %598 = vdwg.mxu0
        %v599 = vmax.f32 %v596, 0.0
        %v600 = vld [vmem:[#allocation8] sm:$0xff]
        %v601 = vld [vmem:[#allocation8 + $0x8] sm:$0xff]
        %v602 = vld [vmem:[#allocation8 + $0x10] sm:$0xff]
        %v603 = vld [vmem:[#allocation8 + $0x18] sm:$0xff]
        %v604 = vld [vmem:[%s5] sm:$0x1]
        %v606 = vlaneseq
        %v607 = vshrl.u32 %v606, 7
        %v608 = vsub.s32 0, %v607
        %v609 = vrot.slane %v604, %v608
        %v612 = vsel %vm525, %v599, 0
        %614 = vmatprep.subr.mxu0 0.0
        %615 = vmatpush1.msra.mxu0 %v600
        %616 = vmatprep.subr.mxu0 0.0
        %617 = vmatpush1.msra.mxu0 %v601
        %618 = vmatprep.subr.mxu0 0.0
        %619 = vmatpush1.msra.mxu0 %v602
        %620 = vmatprep.subr.mxu0 0.0
        %621 = vmatpush1.msra.mxu0 %v603
        %622 = vmatprep.subr.mxu0 0.0
        %623 = vmatpush1.msra.mxu0 0.0
        %624 = vmatprep.subr.mxu0 0.0
        %625 = vmatpush1.msra.mxu0 0.0
        %626 = vmatprep.subr.mxu0 0.0
        %627 = vmatpush1.msra.mxu0 0.0
        %628 = vmatprep.subr.mxu0 0.0
        %629 = vmatpush1.msra.mxu0 0.0
        %630 = vmatprep.subr.mxu0 0.0
        %631 = vmatpush1.msra.mxu0 0.0
        %632 = vmatprep.subr.mxu0 0.0
        %633 = vmatpush1.msra.mxu0 0.0
        %634 = vmatprep.subr.mxu0 0.0
        %635 = vmatpush1.msra.mxu0 0.0
        %636 = vmatprep.subr.mxu0 0.0
        %637 = vmatpush1.msra.mxu0 0.0
        %638 = vmatprep.subr.mxu0 0.0
        %639 = vmatpush1.msra.mxu0 0.0
        %640 = vmatprep.subr.mxu0 0.0
        %641 = vmatpush1.msra.mxu0 0.0
        %642 = vmatprep.subr.mxu0 0.0
        %643 = vmatpush1.msra.mxu0 0.0
        %644 = vmatprep.subr.mxu0 0.0
        %645 = vmatpush1.msra.mxu0 0.0
        %646 = vmatprep.subr.mxu0 0.0
        %647 = vmatpush1.msra.mxu0 0.0
        %648 = vmatprep.subr.mxu0 0.0
        %649 = vmatpush1.msra.mxu0 0.0
        %650 = vmatprep.subr.mxu0 0.0
        %651 = vmatpush1.msra.mxu0 0.0
        %652 = vmatprep.subr.mxu0 0.0
        %653 = vmatpush1.msra.mxu0 0.0
        %654 = vmatprep.subr.mxu0 0.0
        %655 = vmatpush1.msra.mxu0 0.0
        %656 = vmatprep.subr.mxu0 0.0
        %657 = vmatpush1.msra.mxu0 0.0
        %658 = vmatprep.subr.mxu0 0.0
        %659 = vmatpush1.msra.mxu0 0.0
        %660 = vmatprep.subr.mxu0 0.0
        %661 = vmatpush1.msra.mxu0 0.0
        %662 = vmatprep.subr.mxu0 0.0
        %663 = vmatpush1.msra.mxu0 0.0
        %664 = vmatprep.subr.mxu0 0.0
        %665 = vmatpush1.msra.mxu0 0.0
        %666 = vmatprep.subr.mxu0 0.0
        %667 = vmatpush1.msra.mxu0 0.0
        %668 = vmatprep.subr.mxu0 0.0
        %669 = vmatpush1.msra.mxu0 0.0
        %670 = vmatprep.subr.mxu0 0.0
        %671 = vmatpush1.msra.mxu0 0.0
        %672 = vmatprep.subr.mxu0 0.0
        %673 = vmatpush1.msra.mxu0 0.0
        %674 = vmatprep.subr.mxu0 0.0
        %675 = vmatpush1.msra.mxu0 0.0
        %676 = vmatprep.subr.mxu0 0.0
        %677 = vmatpush1.msra.mxu0 0.0
        %678 = vmatprep.mubr.f32.mxu0 0.0
        %679 = vmatmul.mubr.f32.gmra.mrb[0].mxu0 %v612
        %v680 = vpop.f32.mrb[0].mxu0
        %v681 = vadd.f32 %v609, %v680
        %v682 = vpop.f32.mrb[0].mxu0
        %683 = vdwg.mxu0
        %v684 = vld [vmem:[#allocation9] sm:$0xff]
        %v685 = vld [vmem:[#allocation9 + $0x8] sm:$0xff]
        %v686 = vld [vmem:[#allocation9 + $0x10] sm:$0xff]
        %v687 = vld [vmem:[#allocation9 + $0x18] sm:$0xff]
        %v688 = vld [vmem:[%s7] sm:$0x1]
        %v690 = vlaneseq
        %v691 = vshrl.u32 %v690, 7
        %v692 = vsub.s32 0, %v691
        %v693 = vrot.slane %v688, %v692
        %v696 = vsel %vm525, %v513, 0
        %698 = vmatprep.subr.mxu0 0.0
        %699 = vmatpush1.msra.mxu0 %v684
        %700 = vmatprep.subr.mxu0 0.0
        %701 = vmatpush1.msra.mxu0 %v685
        %702 = vmatprep.subr.mxu0 0.0
        %703 = vmatpush1.msra.mxu0 %v686
        %704 = vmatprep.subr.mxu0 0.0
        %705 = vmatpush1.msra.mxu0 %v687
        %706 = vmatprep.subr.mxu0 0.0
        %707 = vmatpush1.msra.mxu0 0.0
        %708 = vmatprep.subr.mxu0 0.0
        %709 = vmatpush1.msra.mxu0 0.0
        %710 = vmatprep.subr.mxu0 0.0
        %711 = vmatpush1.msra.mxu0 0.0
        %712 = vmatprep.subr.mxu0 0.0
        %713 = vmatpush1.msra.mxu0 0.0
        %714 = vmatprep.subr.mxu0 0.0
        %715 = vmatpush1.msra.mxu0 0.0
        %716 = vmatprep.subr.mxu0 0.0
        %717 = vmatpush1.msra.mxu0 0.0
        %718 = vmatprep.subr.mxu0 0.0
        %719 = vmatpush1.msra.mxu0 0.0
        %720 = vmatprep.subr.mxu0 0.0
        %721 = vmatpush1.msra.mxu0 0.0
        %722 = vmatprep.subr.mxu0 0.0
        %723 = vmatpush1.msra.mxu0 0.0
        %724 = vmatprep.subr.mxu0 0.0
        %725 = vmatpush1.msra.mxu0 0.0
        %726 = vmatprep.subr.mxu0 0.0
        %727 = vmatpush1.msra.mxu0 0.0
        %728 = vmatprep.subr.mxu0 0.0
        %729 = vmatpush1.msra.mxu0 0.0
        %730 = vmatprep.subr.mxu0 0.0
        %731 = vmatpush1.msra.mxu0 0.0
        %732 = vmatprep.subr.mxu0 0.0
        %733 = vmatpush1.msra.mxu0 0.0
        %734 = vmatprep.subr.mxu0 0.0
        %735 = vmatpush1.msra.mxu0 0.0
        %736 = vmatprep.subr.mxu0 0.0
        %737 = vmatpush1.msra.mxu0 0.0
        %738 = vmatprep.subr.mxu0 0.0
        %739 = vmatpush1.msra.mxu0 0.0
        %740 = vmatprep.subr.mxu0 0.0
        %741 = vmatpush1.msra.mxu0 0.0
        %742 = vmatprep.subr.mxu0 0.0
        %743 = vmatpush1.msra.mxu0 0.0
        %744 = vmatprep.subr.mxu0 0.0
        %745 = vmatpush1.msra.mxu0 0.0
        %746 = vmatprep.subr.mxu0 0.0
        %747 = vmatpush1.msra.mxu0 0.0
        %748 = vmatprep.subr.mxu0 0.0
        %749 = vmatpush1.msra.mxu0 0.0
        %750 = vmatprep.subr.mxu0 0.0
        %751 = vmatpush1.msra.mxu0 0.0
        %752 = vmatprep.subr.mxu0 0.0
        %753 = vmatpush1.msra.mxu0 0.0
        %754 = vmatprep.subr.mxu0 0.0
        %755 = vmatpush1.msra.mxu0 0.0
        %756 = vmatprep.subr.mxu0 0.0
        %757 = vmatpush1.msra.mxu0 0.0
        %758 = vmatprep.subr.mxu0 0.0
        %759 = vmatpush1.msra.mxu0 0.0
        %760 = vmatprep.subr.mxu0 0.0
        %761 = vmatpush1.msra.mxu0 0.0
        %762 = vmatprep.mubr.f32.mxu0 0.0
        %763 = vmatmul.mubr.f32.gmra.mrb[0].mxu0 %v696
        %v764 = vpop.f32.mrb[0].mxu0
        %v765 = vadd.f32 %v693, %v764
        %v766 = vpop.f32.mrb[0].mxu0
        %767 = vdwg.mxu0
        %v768 = vadd.f32 %v681, %v765
        %v769 = vxor.u32 %v768, 2147483648
        %v770 = vmul.f32 %v769, 1.442695
        %v771 = vpow.pop %v770
        %v772 = vadd.f32 %v771, 1.0
        %v773 = vrcp.pop %v772
        %v774 = vmul.f32 1.0, %v773
        %776 = vrot.lane.b32.xlu0 %v765, 64
        %v777 = vpop.permute.xlu0 %776
        %v779 = vmul.f32 %v774, %v777
        %781 = vrot.lane.b32.xlu0 %v779, 64
        %v782 = vpop.permute.xlu0 %781
        %v784 = vadd.f32 %v681, %v782
        %v785 = vtanh.pop %v784
        %v786 = vsub.f32 1.0, %v774
        %788 = vrot.lane.b32.xlu0 %v785, 96
        %v789 = vpop.permute.xlu0 %788
        %v791 = vmul.f32 %v786, %v789
        %792 = vrot.lane.b32.xlu0 %v513, 32
        %v793 = vpop.permute.xlu0 %792
        %v795 = vmul.f32 %v774, %v793
        %v796 = vadd.f32 %v791, %v795
        %798 = vrot.lane.b32.xlu0 %v796, 96
        %v799 = vpop.permute.xlu0 %798
        %801 = vst.msk [vmem:[#allocation2] sm:$0xff] %vm525, %v799
        %802 = vst.msk [vmem:[%s496] sm:$0xff] %vm525, %v799
        %v803 = vld [vmem:[%s8] sm:$0xff]
        %v804 = vld [vmem:[%s8 + $0x8] sm:$0xff]
        %v805 = vld [vmem:[%s8 + $0x10] sm:$0xff]
        %v806 = vld [vmem:[%s8 + $0x18] sm:$0xff]
        %v807 = vld [vmem:[%s9] sm:$0x1]
        %v809 = vlaneseq
        %v810 = vshrl.u32 %v809, 7
        %v811 = vsub.s32 0, %v810
        %v812 = vrot.slane %v807, %v811
        %v814 = vsel %vm525, %v799, 0
        %816 = vmatprep.subr.mxu0 0.0
        %817 = vmatpush1.msra.mxu0 %v803
        %818 = vmatprep.subr.mxu0 0.0
        %819 = vmatpush1.msra.mxu0 %v804
        %820 = vmatprep.subr.mxu0 0.0
        %821 = vmatpush1.msra.mxu0 %v805
        %822 = vmatprep.subr.mxu0 0.0
        %823 = vmatpush1.msra.mxu0 %v806
        %824 = vmatprep.subr.mxu0 0.0
        %825 = vmatpush1.msra.mxu0 0.0
        %826 = vmatprep.subr.mxu0 0.0
        %827 = vmatpush1.msra.mxu0 0.0
        %828 = vmatprep.subr.mxu0 0.0
        %829 = vmatpush1.msra.mxu0 0.0
        %830 = vmatprep.subr.mxu0 0.0
        %831 = vmatpush1.msra.mxu0 0.0
        %832 = vmatprep.subr.mxu0 0.0
        %833 = vmatpush1.msra.mxu0 0.0
        %834 = vmatprep.subr.mxu0 0.0
        %835 = vmatpush1.msra.mxu0 0.0
        %836 = vmatprep.subr.mxu0 0.0
        %837 = vmatpush1.msra.mxu0 0.0
        %838 = vmatprep.subr.mxu0 0.0
        %839 = vmatpush1.msra.mxu0 0.0
        %840 = vmatprep.subr.mxu0 0.0
        %841 = vmatpush1.msra.mxu0 0.0
        %842 = vmatprep.subr.mxu0 0.0
        %843 = vmatpush1.msra.mxu0 0.0
        %844 = vmatprep.subr.mxu0 0.0
        %845 = vmatpush1.msra.mxu0 0.0
        %846 = vmatprep.subr.mxu0 0.0
        %847 = vmatpush1.msra.mxu0 0.0
        %848 = vmatprep.subr.mxu0 0.0
        %849 = vmatpush1.msra.mxu0 0.0
        %850 = vmatprep.subr.mxu0 0.0
        %851 = vmatpush1.msra.mxu0 0.0
        %852 = vmatprep.subr.mxu0 0.0
        %853 = vmatpush1.msra.mxu0 0.0
        %854 = vmatprep.subr.mxu0 0.0
        %855 = vmatpush1.msra.mxu0 0.0
        %856 = vmatprep.subr.mxu0 0.0
        %857 = vmatpush1.msra.mxu0 0.0
        %858 = vmatprep.subr.mxu0 0.0
        %859 = vmatpush1.msra.mxu0 0.0
        %860 = vmatprep.subr.mxu0 0.0
        %861 = vmatpush1.msra.mxu0 0.0
        %862 = vmatprep.subr.mxu0 0.0
        %863 = vmatpush1.msra.mxu0 0.0
        %864 = vmatprep.subr.mxu0 0.0
        %865 = vmatpush1.msra.mxu0 0.0
        %866 = vmatprep.subr.mxu0 0.0
        %867 = vmatpush1.msra.mxu0 0.0
        %868 = vmatprep.subr.mxu0 0.0
        %869 = vmatpush1.msra.mxu0 0.0
        %870 = vmatprep.subr.mxu0 0.0
        %871 = vmatpush1.msra.mxu0 0.0
        %872 = vmatprep.subr.mxu0 0.0
        %873 = vmatpush1.msra.mxu0 0.0
        %874 = vmatprep.subr.mxu0 0.0
        %875 = vmatpush1.msra.mxu0 0.0
        %876 = vmatprep.subr.mxu0 0.0
        %877 = vmatpush1.msra.mxu0 0.0
        %878 = vmatprep.subr.mxu0 0.0
        %879 = vmatpush1.msra.mxu0 0.0
        %880 = vmatprep.mubr.f32.mxu0 0.0
        %881 = vmatmul.mubr.f32.gmra.mrb[0].mxu0 %v814
        %v882 = vpop.f32.mrb[0].mxu0
        %v883 = vadd.f32 %v812, %v882
        %v884 = vpop.f32.mrb[0].mxu0
        %885 = vdwg.mxu0
        %vm886 = vcmask 64512
        %887 = vst.msk [vmem:[%s504] sm:$0xff] %vm886, %v883
        %p888 = scmp.lt.s32.totalorder %s38, 7
        %s889 = scalar_select %p888, %s38, 7
        %p890 = scmp.lt.s32.totalorder %s37, 1
        %s891 = scalar_select %p890, %s37, 1
        %s892 = smul.addr %s889, 2
        %s893 = sadd.s32 %s891, %s892
        %s894 = smul.addr %s893, 8
        %s895 = scalar_lea.vmem %s10, %s894
        %s896 = sand.u32 %s303, 1
        %s897 = scalar_lea.sflag [#allocation5], %s896
        %s898 = sand.u32 %s303, 1
        %s899 = smul.addr %s898, 8
        %s900 = scalar_lea.vmem [#allocation11], %s899
        // Predicated region
        $region81: #{tpu_custom_call.1} parent=59 // pred_check
          %p901 = pneg %p287
        $region82: #{tpu_custom_call.1} parent=59 // pred_check_branch
          %903 = sbr.rel (%p901) target = $region84
        $region83: #{tpu_custom_call.1} parent=59 // pred_region
          _
        $region84: #{tpu_custom_call.1} parent=59 // pred_fallthru
          _
        // Predicated region
        $region85: #{tpu_custom_call.1} parent=59 // pred_check
          %p904 = pneg %p313
        $region86: #{tpu_custom_call.1} parent=59 // pred_check_branch
          %906 = sbr.rel (%p904) target = $region88
        $region87: #{tpu_custom_call.1} parent=59 // pred_region
          %s908 = ssub.s32 128, 128
          %909 = vsyncadd %s897, %s908
          %s910 = smul.addr %s37, 128
          %s911 = scalar_lea.hbm %s11, %s910
          %s913 = sshll.u32 %s900, 4
          %s914 = int_to_ptr.vmem [resolvable:$true] %s913
          %916 = dma.vmem_to_hbm [thread:$0]  %s914, 128, %s911, %s897
        $region88: #{tpu_custom_call.1} parent=59 // pred_fallthru
          _
      $region60: #{tpu_custom_call.1} parent=5 // pred_fallthru
        _
      %p917 = scmp.le.s32.totalorder 2, %s28
      // Predicated region
      $region89: #{tpu_custom_call.1} parent=5 // pred_check
        %p918 = pneg %p917
      $region90: #{tpu_custom_call.1} parent=5 // pred_check_branch
        %920 = sbr.rel (%p918) target = $region92
      $region91: #{tpu_custom_call.1} parent=5 // pred_region
        %s921 = ssub.s32 %s28, 2
        // Predicated region
        $region93: #{tpu_custom_call.1} parent=91 // pred_check
          %p922 = pneg %p293
        $region94: #{tpu_custom_call.1} parent=91 // pred_check_branch
          %924 = sbr.rel (%p922) target = $region96
        $region95: #{tpu_custom_call.1} parent=91 // pred_region
          %p925 = scmp.lt.s32.totalorder %s40, 7
          %s926 = scalar_select %p925, %s40, 7
          %p927 = scmp.lt.s32.totalorder %s39, 1
          %s928 = scalar_select %p927, %s39, 1
          %s929 = smul.addr %s926, 2
          %s930 = sadd.s32 %s928, %s929
          %s931 = smul.addr %s930, 8
          %s932 = scalar_lea.vmem %s10, %s931
        $region96: #{tpu_custom_call.1} parent=91 // pred_fallthru
          _
        // Predicated region
        $region97: #{tpu_custom_call.1} parent=91 // pred_check
          %p933 = pneg %p319
        $region98: #{tpu_custom_call.1} parent=91 // pred_check_branch
          %935 = sbr.rel (%p933) target = $region100
        $region99: #{tpu_custom_call.1} parent=91 // pred_region
          %s936 = sand.u32 %s304, 1
          %s937 = scalar_lea.sflag [#allocation5], %s936
          %s938 = sand.u32 %s304, 1
          %s939 = smul.addr %s938, 8
          %s940 = scalar_lea.vmem [#allocation11], %s939
          %941 = dma.done %s937, 128
        $region100: #{tpu_custom_call.1} parent=91 // pred_fallthru
          _
      $region92: #{tpu_custom_call.1} parent=5 // pred_fallthru
        _
    $region6: #{tpu_custom_call.1} parent=1 // loop_footer
      %s32 = sadd.s32 1, %s28
    $region7: #{tpu_custom_call.1} parent=1 // loop_footer_branch
      %27 = sbr.rel target = $region3
    $region8: #{tpu_custom_call.1} parent=1 // loop_exit
      _
    %942 = vsyncpa [#allocation4], 1
    %s943 = scalar_lea.sflag [#allocation4], 1
    %944 = vsyncpa %s943, 1
    %945 = vsyncpa [#allocation7], 1
    %s946 = scalar_lea.sflag [#allocation7], 1
    %947 = vsyncpa %s946, 1
    %948 = vsyncpa [#allocation10], 1
    %949 = vsyncpa [#allocation5], 1
    %s950 = scalar_lea.sflag [#allocation5], 1
    %951 = vsyncpa %s950, 1

</llo_original>
